<compile_context>
chip_gen: v7x
topology: tpu7x:2x2x1
jax: 0.10.0
libtpu: 0.0.40
codegen_flags: <defaults>
</compile_context>

<pallas_src>
import math

import jax
import jax.numpy as jnp
from jax import lax
from jax.experimental import pallas as pl
from jax.experimental.pallas import tpu as pltpu


_TB = 8192  # batch-tile (rows) for the gridded large-batch path


def _softplus_f32(h):
    # PyTorch nn.Softplus(beta=1, threshold=20): log(1 + exp(x)); identity x>20.
    sp = jnp.log1p(jnp.exp(jnp.minimum(h, 20.0)))
    return jnp.where(h > 20.0, h, sp)


def _make_fused_mlp_kernel(n_layers: int):
    """Kernel computing the whole MLP in transposed [features, batch] layout."""

    def kernel(*refs):
        x_ref = refs[0]          # [TB, in_f]   (natural layout, feature dim small)
        o_ref = refs[-1]         # [out_f, TB]  (transposed, batch on lanes)
        wb = refs[1:-1]          # (w0, b0, w1, b1, ...): w [out, in], b [out, 1]

        x = x_ref[...].astype(jnp.float32)
        w0 = wb[0][...].astype(jnp.float32)
        b0 = wb[1][...].astype(jnp.float32)
        # First layer: contract the feature axis of both operands (a @ b.T),
        # producing h directly in [out0, TB] layout — batch on the lane axis.
        h = lax.dot_general(
            w0, x,
            dimension_numbers=(((1,), (1,)), ((), ())),
            preferred_element_type=jnp.float32,
        ) + b0
        for i in range(1, n_layers):
            h = _softplus_f32(h)                       # lane-dense EUP/VPU work
            w = wb[2 * i][...].astype(jnp.float32)     # [out_i, in_i]
            b = wb[2 * i + 1][...].astype(jnp.float32)  # [out_i, 1]
            h = jnp.dot(w, h, preferred_element_type=jnp.float32) + b
        o_ref[...] = h.astype(o_ref.dtype)             # dense 128-wide stores

    return kernel


def mlp_forward(x, params):
    """Fused MLP forward.

    x: [batch, in_f]; params: tuple of (w, b) with w [out_f, in_f] (PyTorch
    orientation) and b [out_f, 1].  Returns [batch, out_f].
    """
    batch, in_f = x.shape
    n_layers = len(params)
    out_f = params[-1][0].shape[0]

    flat = []
    for w, b in params:
        flat.append(w)
        flat.append(b)
    kernel = _make_fused_mlp_kernel(n_layers)

    if batch <= _TB:
        # Small batch: one gridless launch, everything resident in VMEM.
        n_in = 1 + 2 * n_layers
        out_t = pl.pallas_call(
            kernel,
            out_shape=jax.ShapeDtypeStruct((out_f, batch), x.dtype),
            in_specs=[pl.BlockSpec(memory_space=pltpu.MemorySpace.VMEM)] * n_in,
            out_specs=pl.BlockSpec(memory_space=pltpu.MemorySpace.VMEM),
        )(x, *flat)
        return out_t.T

    # Large batch: 1-D "parallel" grid over batch tiles of _TB rows.  The batch
    # is zero-padded to a multiple of _TB (padded rows sliced off below);
    # weights/biases are VMEM-resident across all grid steps.
    n_tiles = pl.cdiv(batch, _TB)
    padded = n_tiles * _TB
    x_pad = jnp.pad(x, ((0, padded - batch), (0, 0))) if padded != batch else x

    in_specs = [pl.BlockSpec((_TB, in_f), lambda i: (i, 0))]
    for w, b in params:
        in_specs.append(pl.BlockSpec(w.shape, lambda i: (0, 0)))
        in_specs.append(pl.BlockSpec(b.shape, lambda i: (0, 0)))

    out_t = pl.pallas_call(
        kernel,
        out_shape=jax.ShapeDtypeStruct((out_f, padded), x.dtype),
        grid=(n_tiles,),
        in_specs=in_specs,
        out_specs=pl.BlockSpec((out_f, _TB), lambda i: (0, i)),
        compiler_params=pltpu.CompilerParams(
            dimension_semantics=("parallel",),
            vmem_limit_bytes=48 * 1024 * 1024,
        ),
    )(x_pad, *flat)

    # Single small transpose back to the module's natural [batch, out_f] layout.
    # (Callers able to consume [out_f, batch] directly can skip this.)
    return out_t[:, :batch].T


def init_mlp_params(key, channels):
    """Mirror nn.Linear default init, then scale by 1e-4 (matching the
    `transf.weight *= 0.0001; transf.bias *= 0.0001` in MLP.__init__).
    Weights kept in PyTorch [out_features, in_features] orientation."""
    params = []
    for i in range(len(channels) - 1):
        in_f, out_f = channels[i], channels[i + 1]
        key, kw, kb = jax.random.split(key, 3)
        bound = 1.0 / math.sqrt(in_f)
        w = jax.random.uniform(kw, (out_f, in_f), jnp.float32, -bound, bound) * 1e-4
        b = jax.random.uniform(kb, (out_f, 1), jnp.float32, -bound, bound) * 1e-4
        params.append((w, b))
    return params


def _mlp_reference(x, params):
    """Pure-JAX reference for correctness checking."""
    h = x
    for i, (w, b) in enumerate(params):
        if i > 0:
            h = jnp.where(h > 20.0, h, jnp.log1p(jnp.exp(jnp.minimum(h, 20.0))))
        h = h @ w.T + b[:, 0]
    return h


if __name__ == "__main__":
    # MLP(channels) -> Linear(16,32), Softplus, Linear(32,32), Softplus, Linear(32,8)
    channels = [16, 32, 32, 8]

    key = jax.random.PRNGKey(0)
    key, kx = jax.random.split(key)
    params = tuple(init_mlp_params(key, channels))

    fwd = jax.jit(mlp_forward)

    # 1) Small batch -> gridless VMEM-resident path.
    batch_small = 8
    x_small = jax.random.normal(kx, (batch_small, channels[0]), jnp.float32)
    y_small = fwd(x_small, params)
    jax.block_until_ready(y_small)
    assert y_small.shape == (batch_small, channels[-1]), y_small.shape
    assert y_small.dtype == jnp.float32
    ref_small = _mlp_reference(x_small, params)
    assert jnp.allclose(y_small, ref_small, atol=1e-6, rtol=1e-5), float(
        jnp.max(jnp.abs(y_small - ref_small))
    )

    # 2) Batch > tile and not a multiple of it -> gridded (cdiv + pad) path.
    batch_big = _TB + 300
    key, kx2 = jax.random.split(key)
    x_big = jax.random.normal(kx2, (batch_big, channels[0]), jnp.float32)
    y_big = fwd(x_big, params)
    jax.block_until_ready(y_big)
    assert y_big.shape == (batch_big, channels[-1]), y_big.shape
    ref_big = _mlp_reference(x_big, params)
    assert jnp.allclose(y_big, ref_big, atol=1e-6, rtol=1e-5), float(
        jnp.max(jnp.abs(y_big - ref_big))
    )

    print("KERNEL_OK")
</pallas_src>

<mosaic_0001>
module attributes {stable_mosaic.version = 11 : i64} {
  func.func @kernel(%arg0: memref<8x16xf32, #tpu.memory_space<vmem>>, %arg1: memref<32x16xf32, #tpu.memory_space<vmem>>, %arg2: memref<32x1xf32, #tpu.memory_space<vmem>>, %arg3: memref<32x32xf32, #tpu.memory_space<vmem>>, %arg4: memref<32x1xf32, #tpu.memory_space<vmem>>, %arg5: memref<8x32xf32, #tpu.memory_space<vmem>>, %arg6: memref<8x1xf32, #tpu.memory_space<vmem>>, %arg7: memref<8x8xf32, #tpu.memory_space<vmem>>) attributes {dimension_semantics = [], scalar_prefetch = 0 : i64, scratch_operands = 0 : i64, tpu.core_type = #tpu.core_type<tc>} {
    %c0 = arith.constant 0 : index
    %c0_0 = arith.constant 0 : index
    %0 = vector.load %arg0[%c0, %c0_0] : memref<8x16xf32, #tpu.memory_space<vmem>>, vector<8x16xf32>
    %c0_1 = arith.constant 0 : index
    %c0_2 = arith.constant 0 : index
    %1 = vector.load %arg1[%c0_1, %c0_2] : memref<32x16xf32, #tpu.memory_space<vmem>>, vector<32x16xf32>
    %c0_3 = arith.constant 0 : index
    %c0_4 = arith.constant 0 : index
    %2 = vector.load %arg2[%c0_3, %c0_4] : memref<32x1xf32, #tpu.memory_space<vmem>>, vector<32x1xf32>
    %cst = arith.constant dense<0.000000e+00> : vector<32x8xf32>
    %3 = tpu.matmul %1, %0, %cst {dimension_numbers = #tpu.dot_dimension_numbers<[1], [1], [0], [0], [0, 0, 1, 0], [], []>} : vector<32x16xf32>, vector<8x16xf32>, vector<32x8xf32> -> vector<32x8xf32>
    %4 = vector.broadcast %2 : vector<32x1xf32> to vector<32x8xf32>
    %5 = arith.addf %3, %4 : vector<32x8xf32>
    %cst_5 = arith.constant 2.000000e+01 : f32
    %6 = vector.broadcast %cst_5 : f32 to vector<32x8xf32>
    %7 = arith.minimumf %5, %6 : vector<32x8xf32>
    %8 = math.exp %7 : vector<32x8xf32>
    %9 = math.log1p %8 : vector<32x8xf32>
    %cst_6 = arith.constant 2.000000e+01 : f32
    %10 = vector.broadcast %cst_6 : f32 to vector<32x8xf32>
    %11 = arith.cmpf ogt, %5, %10 : vector<32x8xf32>
    %12 = arith.select %11, %5, %9 : vector<32x8xi1>, vector<32x8xf32>
    %c0_7 = arith.constant 0 : index
    %c0_8 = arith.constant 0 : index
    %13 = vector.load %arg3[%c0_7, %c0_8] : memref<32x32xf32, #tpu.memory_space<vmem>>, vector<32x32xf32>
    %c0_9 = arith.constant 0 : index
    %c0_10 = arith.constant 0 : index
    %14 = vector.load %arg4[%c0_9, %c0_10] : memref<32x1xf32, #tpu.memory_space<vmem>>, vector<32x1xf32>
    %cst_11 = arith.constant dense<0.000000e+00> : vector<32x8xf32>
    %15 = tpu.matmul %13, %12, %cst_11 {dimension_numbers = #tpu.dot_dimension_numbers<[1], [0], [0], [1], [0, 0, 1, 1], [], []>} : vector<32x32xf32>, vector<32x8xf32>, vector<32x8xf32> -> vector<32x8xf32>
    %16 = vector.broadcast %14 : vector<32x1xf32> to vector<32x8xf32>
    %17 = arith.addf %15, %16 : vector<32x8xf32>
    %cst_12 = arith.constant 2.000000e+01 : f32
    %18 = vector.broadcast %cst_12 : f32 to vector<32x8xf32>
    %19 = arith.minimumf %17, %18 : vector<32x8xf32>
    %20 = math.exp %19 : vector<32x8xf32>
    %21 = math.log1p %20 : vector<32x8xf32>
    %cst_13 = arith.constant 2.000000e+01 : f32
    %22 = vector.broadcast %cst_13 : f32 to vector<32x8xf32>
    %23 = arith.cmpf ogt, %17, %22 : vector<32x8xf32>
    %24 = arith.select %23, %17, %21 : vector<32x8xi1>, vector<32x8xf32>
    %c0_14 = arith.constant 0 : index
    %c0_15 = arith.constant 0 : index
    %25 = vector.load %arg5[%c0_14, %c0_15] : memref<8x32xf32, #tpu.memory_space<vmem>>, vector<8x32xf32>
    %c0_16 = arith.constant 0 : index
    %c0_17 = arith.constant 0 : index
    %26 = vector.load %arg6[%c0_16, %c0_17] : memref<8x1xf32, #tpu.memory_space<vmem>>, vector<8x1xf32>
    %cst_18 = arith.constant dense<0.000000e+00> : vector<8x8xf32>
    %27 = tpu.matmul %25, %24, %cst_18 {dimension_numbers = #tpu.dot_dimension_numbers<[1], [0], [0], [1], [0, 0, 1, 1], [], []>} : vector<8x32xf32>, vector<32x8xf32>, vector<8x8xf32> -> vector<8x8xf32>
    %28 = vector.broadcast %26 : vector<8x1xf32> to vector<8x8xf32>
    %29 = arith.addf %27, %28 : vector<8x8xf32>
    %c0_19 = arith.constant 0 : index
    %c0_20 = arith.constant 0 : index
    %30 = vector.load %arg7[%c0_19, %c0_20] : memref<8x8xf32, #tpu.memory_space<vmem>>, vector<8x8xf32>
    tpu.vector_store %arg7[%c0_19, %c0_20], %29 {strides = array<i32>} : memref<8x8xf32, #tpu.memory_space<vmem>>, vector<8x8xf32>,
    return
  }
}

</mosaic_0001>

<llo_original>
// kernel: mlp_forward.1
$region0: #{mlp_forward.1}
  #allocation0 [shape = 'u32[]', space=smem, size = 0x4, offset = 0x4, fixed_abs, tag = 'smem constant byte address 0x4 - core index']
  #allocation1 [shape = 'u32[144,128]{1,0:T(1,128)}', space=vmem, size = 0x12000, scoped, tag = 'internal scratch']
  %s0 = inlined_call_operand.vmem [shape: f32[8,16], index: 0, kind: input, shape index: {}]
  %s1 = inlined_call_operand.vmem [shape: f32[32,16], index: 1, kind: input, shape index: {}]
  %s2 = inlined_call_operand.vmem [shape: f32[32,1], index: 2, kind: input, shape index: {}]
  %s3 = inlined_call_operand.vmem [shape: f32[32,32], index: 3, kind: input, shape index: {}]
  %s4 = inlined_call_operand.vmem [shape: f32[32,1], index: 4, kind: input, shape index: {}]
  %s5 = inlined_call_operand.vmem [shape: f32[8,32], index: 5, kind: input, shape index: {}]
  %s6 = inlined_call_operand.vmem [shape: f32[8,1], index: 6, kind: input, shape index: {}]
  %s7 = inlined_call_operand.vmem [shape: f32[8,8], index: 7, kind: output, shape index: {}]
  %s8 = sld [smem:[#allocation0]]
  $region38: #{mlp_forward.1} parent=0
    _
  %s10 = ssub.s32 1, %s8
  %s11 = scalar_select 0, %s10, %s8
  // Predicated region
  $region2: #{mlp_forward.1} parent=0 // pred_check
    _
  $region3: #{mlp_forward.1} parent=0 // pred_check_branch
    %13 = sbr.rel (0) target = $region5
  $region4: #{mlp_forward.1} parent=0 // pred_region
    _
  $region5: #{mlp_forward.1} parent=0 // pred_fallthru
    _
  // Predicated region
  $region6: #{mlp_forward.1} parent=0 // pred_check
    _
  $region7: #{mlp_forward.1} parent=0 // pred_check_branch
    %15 = sbr.rel (0) target = $region9
  $region8: #{mlp_forward.1} parent=0 // pred_region
    _
  $region9: #{mlp_forward.1} parent=0 // pred_fallthru
    _
  // Predicated region
  $region10: #{mlp_forward.1} parent=0 // pred_check
    _
  $region11: #{mlp_forward.1} parent=0 // pred_check_branch
    %17 = sbr.rel (0) target = $region13
  $region12: #{mlp_forward.1} parent=0 // pred_region
    _
  $region13: #{mlp_forward.1} parent=0 // pred_fallthru
    _
  // Predicated region
  $region14: #{mlp_forward.1} parent=0 // pred_check
    _
  $region15: #{mlp_forward.1} parent=0 // pred_check_branch
    %19 = sbr.rel (0) target = $region17
  $region16: #{mlp_forward.1} parent=0 // pred_region
    _
  $region17: #{mlp_forward.1} parent=0 // pred_fallthru
    _
  // Predicated region
  $region18: #{mlp_forward.1} parent=0 // pred_check
    _
  $region19: #{mlp_forward.1} parent=0 // pred_check_branch
    %21 = sbr.rel (0) target = $region21
  $region20: #{mlp_forward.1} parent=0 // pred_region
    _
  $region21: #{mlp_forward.1} parent=0 // pred_fallthru
    _
  // Predicated region
  $region22: #{mlp_forward.1} parent=0 // pred_check
    _
  $region23: #{mlp_forward.1} parent=0 // pred_check_branch
    %23 = sbr.rel (0) target = $region25
  $region24: #{mlp_forward.1} parent=0 // pred_region
    _
  $region25: #{mlp_forward.1} parent=0 // pred_fallthru
    _
  // Predicated region
  $region26: #{mlp_forward.1} parent=0 // pred_check
    _
  $region27: #{mlp_forward.1} parent=0 // pred_check_branch
    %25 = sbr.rel (0) target = $region29
  $region28: #{mlp_forward.1} parent=0 // pred_region
    _
  $region29: #{mlp_forward.1} parent=0 // pred_fallthru
    _
  %v26 = vld [vmem:[%s0] sm:$0xff]
  %v27 = vld [vmem:[%s1] sm:$0xff]
  %v28 = vld [vmem:[%s1 + $0x8] sm:$0xff]
  %v29 = vld [vmem:[%s1 + $0x10] sm:$0xff]
  %v30 = vld [vmem:[%s1 + $0x18] sm:$0xff]
  %v31 = vld [vmem:[%s2] sm:$0xff]
  %v32 = vld [vmem:[%s2 + $0x8] sm:$0xff]
  %v33 = vld [vmem:[%s2 + $0x10] sm:$0xff]
  %v34 = vld [vmem:[%s2 + $0x18] sm:$0xff]
  %36 = vset.pattern.permute.xlu0 0
  %37 = vperm.xlu0 %36, %v31
  %v38 = vpop.permute.xlu0 %37
  %41 = vset.pattern.permute.xlu0 0
  %42 = vperm.xlu0 %41, %v32
  %v43 = vpop.permute.xlu0 %42
  %46 = vset.pattern.permute.xlu0 0
  %47 = vperm.xlu0 %46, %v33
  %v48 = vpop.permute.xlu0 %47
  %51 = vset.pattern.permute.xlu0 0
  %52 = vperm.xlu0 %51, %v34
  %v53 = vpop.permute.xlu0 %52
  %vm55 = vcmask 130048
  %v57 = vsel %vm55, %v27, 0
  %v60 = vsel %vm55, %v28, 0
  %v63 = vsel %vm55, %v29, 0
  %v66 = vsel %vm55, %v30, 0
  %v69 = vsel %vm55, %v26, 0
  %71 = vmatprep.subr.mxu0 0.0
  %72 = vmatpush1.xpose.msra.mxu0 %v69
  %73 = vmatprep.subr.mxu0 0.0
  %74 = vmatpush1.xpose.msra.mxu0 0.0
  %75 = vmatprep.subr.mxu0 0.0
  %76 = vmatpush1.xpose.msra.mxu0 0.0
  %77 = vmatprep.subr.mxu0 0.0
  %78 = vmatpush1.xpose.msra.mxu0 0.0
  %79 = vmatprep.subr.mxu0 0.0
  %80 = vmatpush1.xpose.msra.mxu0 0.0
  %81 = vmatprep.subr.mxu0 0.0
  %82 = vmatpush1.xpose.msra.mxu0 0.0
  %83 = vmatprep.subr.mxu0 0.0
  %84 = vmatpush1.xpose.msra.mxu0 0.0
  %85 = vmatprep.subr.mxu0 0.0
  %86 = vmatpush1.xpose.msra.mxu0 0.0
  %87 = vmatprep.subr.mxu0 0.0
  %88 = vmatpush1.xpose.msra.mxu0 0.0
  %89 = vmatprep.subr.mxu0 0.0
  %90 = vmatpush1.xpose.msra.mxu0 0.0
  %91 = vmatprep.subr.mxu0 0.0
  %92 = vmatpush1.xpose.msra.mxu0 0.0
  %93 = vmatprep.subr.mxu0 0.0
  %94 = vmatpush1.xpose.msra.mxu0 0.0
  %95 = vmatprep.subr.mxu0 0.0
  %96 = vmatpush1.xpose.msra.mxu0 0.0
  %97 = vmatprep.subr.mxu0 0.0
  %98 = vmatpush1.xpose.msra.mxu0 0.0
  %99 = vmatprep.subr.mxu0 0.0
  %100 = vmatpush1.xpose.msra.mxu0 0.0
  %101 = vmatprep.subr.mxu0 0.0
  %102 = vmatpush1.xpose.msra.mxu0 0.0
  %103 = vmatprep.subr.mxu0 0.0
  %104 = vmatpush1.xpose.msra.mxu0 0.0
  %105 = vmatprep.subr.mxu0 0.0
  %106 = vmatpush1.xpose.msra.mxu0 0.0
  %107 = vmatprep.subr.mxu0 0.0
  %108 = vmatpush1.xpose.msra.mxu0 0.0
  %109 = vmatprep.subr.mxu0 0.0
  %110 = vmatpush1.xpose.msra.mxu0 0.0
  %111 = vmatprep.subr.mxu0 0.0
  %112 = vmatpush1.xpose.msra.mxu0 0.0
  %113 = vmatprep.subr.mxu0 0.0
  %114 = vmatpush1.xpose.msra.mxu0 0.0
  %115 = vmatprep.subr.mxu0 0.0
  %116 = vmatpush1.xpose.msra.mxu0 0.0
  %117 = vmatprep.subr.mxu0 0.0
  %118 = vmatpush1.xpose.msra.mxu0 0.0
  %119 = vmatprep.subr.mxu0 0.0
  %120 = vmatpush1.xpose.msra.mxu0 0.0
  %121 = vmatprep.subr.mxu0 0.0
  %122 = vmatpush1.xpose.msra.mxu0 0.0
  %123 = vmatprep.subr.mxu0 0.0
  %124 = vmatpush1.xpose.msra.mxu0 0.0
  %125 = vmatprep.subr.mxu0 0.0
  %126 = vmatpush1.xpose.msra.mxu0 0.0
  %127 = vmatprep.subr.mxu0 0.0
  %128 = vmatpush1.xpose.msra.mxu0 0.0
  %129 = vmatprep.subr.mxu0 0.0
  %130 = vmatpush1.xpose.msra.mxu0 0.0
  %131 = vmatprep.subr.mxu0 0.0
  %132 = vmatpush1.xpose.msra.mxu0 0.0
  %133 = vmatprep.subr.mxu0 0.0
  %134 = vmatpush1.xpose.msra.mxu0 0.0
  %135 = vmatprep.mubr.f32.mxu0 0.0
  %136 = vmatmul.mubr.f32.gmra.mrb[0].mxu0 %v57
  %v137 = vpop.f32.mrb[0].mxu0
  %v138 = vadd.f32 %v38, %v137
  %v139 = vpop.f32.mrb[0].mxu0
  %140 = vmatprep.mubr.f32.mxu0 0.0
  %141 = vmatmul.mubr.f32.gmra.mrb[0].mxu0 %v60
  %v142 = vpop.f32.mrb[0].mxu0
  %v143 = vadd.f32 %v43, %v142
  %v144 = vpop.f32.mrb[0].mxu0
  %145 = vmatprep.mubr.f32.mxu0 0.0
  %146 = vmatmul.mubr.f32.gmra.mrb[0].mxu0 %v63
  %v147 = vpop.f32.mrb[0].mxu0
  %v148 = vadd.f32 %v48, %v147
  %v149 = vpop.f32.mrb[0].mxu0
  %150 = vmatprep.mubr.f32.mxu0 0.0
  %151 = vmatmul.mubr.f32.gmra.mrb[0].mxu0 %v66
  %v152 = vpop.f32.mrb[0].mxu0
  %v153 = vadd.f32 %v53, %v152
  %v154 = vpop.f32.mrb[0].mxu0
  %155 = vdwg.mxu0
  %v156 = vmin.f32 %v138, 20.0
  %v157 = vmin.f32 %v143, 20.0
  %v158 = vmin.f32 %v148, 20.0
  %v159 = vmin.f32 %v153, 20.0
  %v160 = vmul.f32 %v156, 1.442695
  %v161 = vpow.pop %v160
  %v162 = vmul.f32 %v157, 1.442695
  %v163 = vpow.pop %v162
  %v164 = vmul.f32 %v158, 1.442695
  %v165 = vpow.pop %v164
  %v166 = vmul.f32 %v159, 1.442695
  %v167 = vpow.pop %v166
  %v168 = vadd.f32 %v161, 1.0
  %v169 = vlog2.pop %v168
  %v170 = vmul.f32 %v169, 0.6931472
  %v171 = vmul.f32 -0.5, %v161
  %v172 = vadd.f32 %v171, 1.0
  %v173 = vmul.f32 %v172, %v161
  %v174 = vand.u32 2147483647, %v161
  %vm175 = vcmp.lt.f32.partialorder %v174, 0.0004427343
  %v176 = vsel %vm175, %v173, %v170
  %v177 = vadd.f32 %v163, 1.0
  %v178 = vlog2.pop %v177
  %v179 = vmul.f32 %v178, 0.6931472
  %v180 = vmul.f32 -0.5, %v163
  %v181 = vadd.f32 %v180, 1.0
  %v182 = vmul.f32 %v181, %v163
  %v183 = vand.u32 2147483647, %v163
  %vm184 = vcmp.lt.f32.partialorder %v183, 0.0004427343
  %v185 = vsel %vm184, %v182, %v179
  %v186 = vadd.f32 %v165, 1.0
  %v187 = vlog2.pop %v186
  %v188 = vmul.f32 %v187, 0.6931472
  %v189 = vmul.f32 -0.5, %v165
  %v190 = vadd.f32 %v189, 1.0
  %v191 = vmul.f32 %v190, %v165
  %v192 = vand.u32 2147483647, %v165
  %vm193 = vcmp.lt.f32.partialorder %v192, 0.0004427343
  %v194 = vsel %vm193, %v191, %v188
  %v195 = vadd.f32 %v167, 1.0
  %v196 = vlog2.pop %v195
  %v197 = vmul.f32 %v196, 0.6931472
  %v198 = vmul.f32 -0.5, %v167
  %v199 = vadd.f32 %v198, 1.0
  %v200 = vmul.f32 %v199, %v167
  %v201 = vand.u32 2147483647, %v167
  %vm202 = vcmp.lt.f32.partialorder %v201, 0.0004427343
  %v203 = vsel %vm202, %v200, %v197
  %vm204 = vcmp.gt.f32.partialorder %v138, 20.0
  %vm205 = vcmp.gt.f32.partialorder %v143, 20.0
  %vm206 = vcmp.gt.f32.partialorder %v148, 20.0
  %vm207 = vcmp.gt.f32.partialorder %v153, 20.0
  %v208 = vsel %vm204, %v138, %v176
  %v209 = vsel %vm205, %v143, %v185
  %v210 = vsel %vm206, %v148, %v194
  %v211 = vsel %vm207, %v153, %v203
  %v212 = vld [vmem:[%s3] sm:$0xff]
  %v213 = vld [vmem:[%s3 + $0x8] sm:$0xff]
  %v214 = vld [vmem:[%s3 + $0x10] sm:$0xff]
  %v215 = vld [vmem:[%s3 + $0x18] sm:$0xff]
  %v216 = vld [vmem:[%s4] sm:$0xff]
  %v217 = vld [vmem:[%s4 + $0x8] sm:$0xff]
  %v218 = vld [vmem:[%s4 + $0x10] sm:$0xff]
  %v219 = vld [vmem:[%s4 + $0x18] sm:$0xff]
  %221 = vset.pattern.permute.xlu0 0
  %222 = vperm.xlu0 %221, %v216
  %v223 = vpop.permute.xlu0 %222
  %226 = vset.pattern.permute.xlu0 0
  %227 = vperm.xlu0 %226, %v217
  %v228 = vpop.permute.xlu0 %227
  %231 = vset.pattern.permute.xlu0 0
  %232 = vperm.xlu0 %231, %v218
  %v233 = vpop.permute.xlu0 %232
  %236 = vset.pattern.permute.xlu0 0
  %237 = vperm.xlu0 %236, %v219
  %v238 = vpop.permute.xlu0 %237
  %vm240 = vcmask 261120
  %v242 = vsel %vm240, %v212, 0
  %v245 = vsel %vm240, %v213, 0
  %v248 = vsel %vm240, %v214, 0
  %v251 = vsel %vm240, %v215, 0
  %253 = vmatprep.subr.mxu0 0.0
  %254 = vmatpush1.msra.mxu0 %v208
  %255 = vmatprep.subr.mxu0 0.0
  %256 = vmatpush1.msra.mxu0 %v209
  %257 = vmatprep.subr.mxu0 0.0
  %258 = vmatpush1.msra.mxu0 %v210
  %259 = vmatprep.subr.mxu0 0.0
  %260 = vmatpush1.msra.mxu0 %v211
  %261 = vmatprep.subr.mxu0 0.0
  %262 = vmatpush1.msra.mxu0 0.0
  %263 = vmatprep.subr.mxu0 0.0
  %264 = vmatpush1.msra.mxu0 0.0
  %265 = vmatprep.subr.mxu0 0.0
  %266 = vmatpush1.msra.mxu0 0.0
  %267 = vmatprep.subr.mxu0 0.0
  %268 = vmatpush1.msra.mxu0 0.0
  %269 = vmatprep.subr.mxu0 0.0
  %270 = vmatpush1.msra.mxu0 0.0
  %271 = vmatprep.subr.mxu0 0.0
  %272 = vmatpush1.msra.mxu0 0.0
  %273 = vmatprep.subr.mxu0 0.0
  %274 = vmatpush1.msra.mxu0 0.0
  %275 = vmatprep.subr.mxu0 0.0
  %276 = vmatpush1.msra.mxu0 0.0
  %277 = vmatprep.subr.mxu0 0.0
  %278 = vmatpush1.msra.mxu0 0.0
  %279 = vmatprep.subr.mxu0 0.0
  %280 = vmatpush1.msra.mxu0 0.0
  %281 = vmatprep.subr.mxu0 0.0
  %282 = vmatpush1.msra.mxu0 0.0
  %283 = vmatprep.subr.mxu0 0.0
  %284 = vmatpush1.msra.mxu0 0.0
  %285 = vmatprep.subr.mxu0 0.0
  %286 = vmatpush1.msra.mxu0 0.0
  %287 = vmatprep.subr.mxu0 0.0
  %288 = vmatpush1.msra.mxu0 0.0
  %289 = vmatprep.subr.mxu0 0.0
  %290 = vmatpush1.msra.mxu0 0.0
  %291 = vmatprep.subr.mxu0 0.0
  %292 = vmatpush1.msra.mxu0 0.0
  %293 = vmatprep.subr.mxu0 0.0
  %294 = vmatpush1.msra.mxu0 0.0
  %295 = vmatprep.subr.mxu0 0.0
  %296 = vmatpush1.msra.mxu0 0.0
  %297 = vmatprep.subr.mxu0 0.0
  %298 = vmatpush1.msra.mxu0 0.0
  %299 = vmatprep.subr.mxu0 0.0
  %300 = vmatpush1.msra.mxu0 0.0
  %301 = vmatprep.subr.mxu0 0.0
  %302 = vmatpush1.msra.mxu0 0.0
  %303 = vmatprep.subr.mxu0 0.0
  %304 = vmatpush1.msra.mxu0 0.0
  %305 = vmatprep.subr.mxu0 0.0
  %306 = vmatpush1.msra.mxu0 0.0
  %307 = vmatprep.subr.mxu0 0.0
  %308 = vmatpush1.msra.mxu0 0.0
  %309 = vmatprep.subr.mxu0 0.0
  %310 = vmatpush1.msra.mxu0 0.0
  %311 = vmatprep.subr.mxu0 0.0
  %312 = vmatpush1.msra.mxu0 0.0
  %313 = vmatprep.subr.mxu0 0.0
  %314 = vmatpush1.msra.mxu0 0.0
  %315 = vmatprep.subr.mxu0 0.0
  %316 = vmatpush1.msra.mxu0 0.0
  %317 = vmatprep.mubr.f32.mxu0 0.0
  %318 = vmatmul.mubr.f32.gmra.mrb[0].mxu0 %v242
  %v319 = vpop.f32.mrb[0].mxu0
  %v320 = vadd.f32 %v223, %v319
  %v321 = vpop.f32.mrb[0].mxu0
  %322 = vmatprep.mubr.f32.mxu0 0.0
  %323 = vmatmul.mubr.f32.gmra.mrb[0].mxu0 %v245
  %v324 = vpop.f32.mrb[0].mxu0
  %v325 = vadd.f32 %v228, %v324
  %v326 = vpop.f32.mrb[0].mxu0
  %327 = vmatprep.mubr.f32.mxu0 0.0
  %328 = vmatmul.mubr.f32.gmra.mrb[0].mxu0 %v248
  %v329 = vpop.f32.mrb[0].mxu0
  %v330 = vadd.f32 %v233, %v329
  %v331 = vpop.f32.mrb[0].mxu0
  %332 = vmatprep.mubr.f32.mxu0 0.0
  %333 = vmatmul.mubr.f32.gmra.mrb[0].mxu0 %v251
  %v334 = vpop.f32.mrb[0].mxu0
  %v335 = vadd.f32 %v238, %v334
  %v336 = vpop.f32.mrb[0].mxu0
  %337 = vdwg.mxu0
  %v338 = vmin.f32 %v320, 20.0
  %v339 = vmin.f32 %v325, 20.0
  %v340 = vmin.f32 %v330, 20.0
  %v341 = vmin.f32 %v335, 20.0
  %v342 = vmul.f32 %v338, 1.442695
  %v343 = vpow.pop %v342
  %v344 = vmul.f32 %v339, 1.442695
  %v345 = vpow.pop %v344
  %v346 = vmul.f32 %v340, 1.442695
  %v347 = vpow.pop %v346
  %v348 = vmul.f32 %v341, 1.442695
  %v349 = vpow.pop %v348
  %v350 = vadd.f32 %v343, 1.0
  %v351 = vlog2.pop %v350
  %v352 = vmul.f32 %v351, 0.6931472
  %v353 = vmul.f32 -0.5, %v343
  %v354 = vadd.f32 %v353, 1.0
  %v355 = vmul.f32 %v354, %v343
  %v356 = vand.u32 2147483647, %v343
  %vm357 = vcmp.lt.f32.partialorder %v356, 0.0004427343
  %v358 = vsel %vm357, %v355, %v352
  %v359 = vadd.f32 %v345, 1.0
  %v360 = vlog2.pop %v359
  %v361 = vmul.f32 %v360, 0.6931472
  %v362 = vmul.f32 -0.5, %v345
  %v363 = vadd.f32 %v362, 1.0
  %v364 = vmul.f32 %v363, %v345
  %v365 = vand.u32 2147483647, %v345
  %vm366 = vcmp.lt.f32.partialorder %v365, 0.0004427343
  %v367 = vsel %vm366, %v364, %v361
  %v368 = vadd.f32 %v347, 1.0
  %v369 = vlog2.pop %v368
  %v370 = vmul.f32 %v369, 0.6931472
  %v371 = vmul.f32 -0.5, %v347
  %v372 = vadd.f32 %v371, 1.0
  %v373 = vmul.f32 %v372, %v347
  %v374 = vand.u32 2147483647, %v347
  %vm375 = vcmp.lt.f32.partialorder %v374, 0.0004427343
  %v376 = vsel %vm375, %v373, %v370
  %v377 = vadd.f32 %v349, 1.0
  %v378 = vlog2.pop %v377
  %v379 = vmul.f32 %v378, 0.6931472
  %v380 = vmul.f32 -0.5, %v349
  %v381 = vadd.f32 %v380, 1.0
  %v382 = vmul.f32 %v381, %v349
  %v383 = vand.u32 2147483647, %v349
  %vm384 = vcmp.lt.f32.partialorder %v383, 0.0004427343
  %v385 = vsel %vm384, %v382, %v379
  %vm386 = vcmp.gt.f32.partialorder %v320, 20.0
  %vm387 = vcmp.gt.f32.partialorder %v325, 20.0
  %vm388 = vcmp.gt.f32.partialorder %v330, 20.0
  %vm389 = vcmp.gt.f32.partialorder %v335, 20.0
  %v390 = vsel %vm386, %v320, %v358
  %v391 = vsel %vm387, %v325, %v367
  %v392 = vsel %vm388, %v330, %v376
  %v393 = vsel %vm389, %v335, %v385
  %v394 = vld [vmem:[%s5] sm:$0xff]
  %v395 = vld [vmem:[%s6] sm:$0xff]
  %397 = vset.pattern.permute.xlu0 0
  %398 = vperm.xlu0 %397, %v395
  %v399 = vpop.permute.xlu0 %398
  %v402 = vsel %vm240, %v394, 0
  %404 = vmatprep.subr.mxu0 0.0
  %405 = vmatpush1.msra.mxu0 %v390
  %406 = vmatprep.subr.mxu0 0.0
  %407 = vmatpush1.msra.mxu0 %v391
  %408 = vmatprep.subr.mxu0 0.0
  %409 = vmatpush1.msra.mxu0 %v392
  %410 = vmatprep.subr.mxu0 0.0
  %411 = vmatpush1.msra.mxu0 %v393
  %412 = vmatprep.subr.mxu0 0.0
  %413 = vmatpush1.msra.mxu0 0.0
  %414 = vmatprep.subr.mxu0 0.0
  %415 = vmatpush1.msra.mxu0 0.0
  %416 = vmatprep.subr.mxu0 0.0
  %417 = vmatpush1.msra.mxu0 0.0
  %418 = vmatprep.subr.mxu0 0.0
  %419 = vmatpush1.msra.mxu0 0.0
  %420 = vmatprep.subr.mxu0 0.0
  %421 = vmatpush1.msra.mxu0 0.0
  %422 = vmatprep.subr.mxu0 0.0
  %423 = vmatpush1.msra.mxu0 0.0
  %424 = vmatprep.subr.mxu0 0.0
  %425 = vmatpush1.msra.mxu0 0.0
  %426 = vmatprep.subr.mxu0 0.0
  %427 = vmatpush1.msra.mxu0 0.0
  %428 = vmatprep.subr.mxu0 0.0
  %429 = vmatpush1.msra.mxu0 0.0
  %430 = vmatprep.subr.mxu0 0.0
  %431 = vmatpush1.msra.mxu0 0.0
  %432 = vmatprep.subr.mxu0 0.0
  %433 = vmatpush1.msra.mxu0 0.0
  %434 = vmatprep.subr.mxu0 0.0
  %435 = vmatpush1.msra.mxu0 0.0
  %436 = vmatprep.subr.mxu0 0.0
  %437 = vmatpush1.msra.mxu0 0.0
  %438 = vmatprep.subr.mxu0 0.0
  %439 = vmatpush1.msra.mxu0 0.0
  %440 = vmatprep.subr.mxu0 0.0
  %441 = vmatpush1.msra.mxu0 0.0
  %442 = vmatprep.subr.mxu0 0.0
  %443 = vmatpush1.msra.mxu0 0.0
  %444 = vmatprep.subr.mxu0 0.0
  %445 = vmatpush1.msra.mxu0 0.0
  %446 = vmatprep.subr.mxu0 0.0
  %447 = vmatpush1.msra.mxu0 0.0
  %448 = vmatprep.subr.mxu0 0.0
  %449 = vmatpush1.msra.mxu0 0.0
  %450 = vmatprep.subr.mxu0 0.0
  %451 = vmatpush1.msra.mxu0 0.0
  %452 = vmatprep.subr.mxu0 0.0
  %453 = vmatpush1.msra.mxu0 0.0
  %454 = vmatprep.subr.mxu0 0.0
  %455 = vmatpush1.msra.mxu0 0.0
  %456 = vmatprep.subr.mxu0 0.0
  %457 = vmatpush1.msra.mxu0 0.0
  %458 = vmatprep.subr.mxu0 0.0
  %459 = vmatpush1.msra.mxu0 0.0
  %460 = vmatprep.subr.mxu0 0.0
  %461 = vmatpush1.msra.mxu0 0.0
  %462 = vmatprep.subr.mxu0 0.0
  %463 = vmatpush1.msra.mxu0 0.0
  %464 = vmatprep.subr.mxu0 0.0
  %465 = vmatpush1.msra.mxu0 0.0
  %466 = vmatprep.subr.mxu0 0.0
  %467 = vmatpush1.msra.mxu0 0.0
  %468 = vmatprep.mubr.f32.mxu0 0.0
  %469 = vmatmul.mubr.f32.gmra.mrb[0].mxu0 %v402
  %v470 = vpop.f32.mrb[0].mxu0
  %v471 = vadd.f32 %v399, %v470
  %v472 = vpop.f32.mrb[0].mxu0
  %473 = vdwg.mxu0
  %vm474 = vcmask 64512
  %475 = vst.msk [vmem:[%s7] sm:$0xff] %vm474, %v471
  // Predicated region
  $region30: #{mlp_forward.1} parent=0 // pred_check
    _
  $region31: #{mlp_forward.1} parent=0 // pred_check_branch
    %477 = sbr.rel (0) target = $region33
  $region32: #{mlp_forward.1} parent=0 // pred_region
    _
  $region33: #{mlp_forward.1} parent=0 // pred_fallthru
    _
  // Predicated region
  $region34: #{mlp_forward.1} parent=0 // pred_check
    _
  $region35: #{mlp_forward.1} parent=0 // pred_check_branch
    %479 = sbr.rel (0) target = $region37
  $region36: #{mlp_forward.1} parent=0 // pred_region
    _
  $region37: #{mlp_forward.1} parent=0 // pred_fallthru
    _

</llo_original>
